<compile_context>
chip_gen: v7x
topology: tpu7x:2x2x1
jax: 0.10.0
libtpu: 0.0.40
codegen_flags: <defaults>
</compile_context>

<pallas_src>
import functools

import jax
import jax.numpy as jnp
from jax.experimental import pallas as pl
from jax.experimental.pallas import tpu as pltpu


def gbdt_head_kernel(w_ref, preds_ref, p_ref, out_ref):
    preds = preds_ref[...]                       # (E, TB) per-estimator predictions
    w = w_ref[...]                               # (E, 1)  linear weights (no bias), resident
    p = p_ref[...]                               # (1, TB) bias predictor proba[:, 1]
    # Linear(E -> 1, bias=False): weighted sum over estimator rows
    # (VPU broadcast-multiply + sublane reduce; MXU skipped on purpose).
    y = jnp.sum(preds * w, axis=0, keepdims=True)            # (1, TB)
    # bias = logit(p) = log(p) - log(1 - p); 1-p is exact (Sterbenz) for p >= 0.5.
    bias = jnp.log(p) - jnp.log(1.0 - p)
    out_ref[...] = jax.nn.sigmoid(y + bias)


@functools.partial(jax.jit, static_argnames=("tb",))
def simple_gbdt_forward(preds, weight, bias_proba, *, tb=8192):
    """preds: (B, E) f32, weight: (1, E) f32, bias_proba: (B,) f32 -> (B,) f32."""
    B, E = preds.shape
    # Wrapper-side layout plumbing (free; fused into the producers by XLA):
    preds_t = preds.T.astype(jnp.float32)                     # (E, B)
    p_row = bias_proba.reshape(1, B).astype(jnp.float32)      # (1, B)
    w_col = weight.reshape(E, 1).astype(jnp.float32)          # (E, 1)

    # Batch tile = multiple of 128 lanes; shrink for small B and pad B up to a
    # whole number of tiles.  Pad proba with 0.5 so logit stays finite in the
    # (discarded) padded columns.
    tb = min(tb, pl.cdiv(B, 128) * 128)
    Bp = pl.cdiv(B, tb) * tb
    if Bp != B:
        preds_t = jnp.pad(preds_t, ((0, 0), (0, Bp - B)))
        p_row = jnp.pad(p_row, ((0, 0), (0, Bp - B)), constant_values=0.5)

    out = pl.pallas_call(
        gbdt_head_kernel,
        out_shape=jax.ShapeDtypeStruct((1, Bp), jnp.float32),
        grid=(Bp // tb,),
        in_specs=[
            pl.BlockSpec((E, 1), lambda i: (0, 0)),      # weight: resident, 64 bytes
            pl.BlockSpec((E, tb), lambda i: (0, i)),     # preds batch tile
            pl.BlockSpec((1, tb), lambda i: (0, i)),     # proba batch tile
        ],
        out_specs=pl.BlockSpec((1, tb), lambda i: (0, i)),
        compiler_params=pltpu.CompilerParams(
            dimension_semantics=("parallel",),           # megacore split on v7x
        ),
    )(w_col, preds_t, p_row)

    # matches torch `.view(-1)`; drop batch padding.
    return out.reshape(-1)[:B]


if __name__ == "__main__":
    key = jax.random.PRNGKey(0)
    k_x, k_est, k_bias = jax.random.split(key, 3)

    batch = 300            # not a multiple of 128: exercises padding + multi-tile grid
    features = 32
    n_estimators = 16
    learning_rate = 0.1

    # Synthetic input x (B, features), like the 2-D forward branch.
    x = jax.random.normal(k_x, (batch, features), dtype=jnp.float32)

    # TODO(synk): sklearn DecisionTreeRegressor.predict has no Pallas equivalent;
    # stand in a deterministic linear surrogate per estimator.
    est_w = jax.random.normal(k_est, (features, n_estimators), dtype=jnp.float32) * 0.1
    preds = x @ est_w                                          # (B, E)

    # TODO(synk): bias_predictor.predict_proba (sklearn init estimator) has no
    # Pallas equivalent; synthesize a probability in (0, 1).
    bias_w = jax.random.normal(k_bias, (features,), dtype=jnp.float32) * 0.1
    bias_proba = jnp.clip(jax.nn.sigmoid(x @ bias_w), 1e-6, 1.0 - 1e-6)    # (B,)

    # Linear weights: module sets them to ones * learning_rate.
    weight = jnp.ones((1, n_estimators), dtype=jnp.float32) * learning_rate

    out = simple_gbdt_forward(preds, weight, bias_proba, tb=128)
    jax.block_until_ready(out)

    # Pure-JAX reference check (same math as the torch module).
    ref = jax.nn.sigmoid(preds @ weight.reshape(-1) +
                         jnp.log(bias_proba / (1.0 - bias_proba)))
    assert out.shape == (batch,)
    assert jnp.allclose(out, ref, atol=1e-5), (out, ref)

    print("KERNEL_OK")
</pallas_src>

<mosaic_0001>
module attributes {stable_mosaic.version = 11 : i64} {
  func.func @gbdt_head_kernel(%arg0: i32, %arg1: memref<16x1xf32, #tpu.memory_space<vmem>>, %arg2: memref<16x128xf32, #tpu.memory_space<vmem>>, %arg3: memref<1x128xf32, #tpu.memory_space<vmem>>, %arg4: memref<1x128xf32, #tpu.memory_space<vmem>>) attributes {dimension_semantics = [#tpu.dimension_semantics<parallel>], iteration_bounds = array<i64: 3>, scalar_prefetch = 0 : i64, scratch_operands = 0 : i64, tpu.core_type = #tpu.core_type<tc>, window_params = [{pipeline_mode = #tpu.pipeline_mode<synchronous>, transform_indices = @transform_0, window_bounds = array<i64: 16, 1>}, {transform_indices = @transform_1, window_bounds = array<i64: 16, 128>}, {transform_indices = @transform_2, window_bounds = array<i64: 1, 128>}, {transform_indices = @transform_3, window_bounds = array<i64: 1, 128>}]} {
    %c0 = arith.constant 0 : index
    %c0_0 = arith.constant 0 : index
    %0 = vector.load %arg2[%c0, %c0_0] : memref<16x128xf32, #tpu.memory_space<vmem>>, vector<16x128xf32>
    %c0_1 = arith.constant 0 : index
    %c0_2 = arith.constant 0 : index
    %1 = vector.load %arg1[%c0_1, %c0_2] : memref<16x1xf32, #tpu.memory_space<vmem>>, vector<16x1xf32>
    %c0_3 = arith.constant 0 : index
    %c0_4 = arith.constant 0 : index
    %2 = vector.load %arg3[%c0_3, %c0_4] : memref<1x128xf32, #tpu.memory_space<vmem>>, vector<1x128xf32>
    %3 = vector.broadcast %1 : vector<16x1xf32> to vector<16x128xf32>
    %4 = arith.mulf %0, %3 : vector<16x128xf32>
    %cst = arith.constant dense<0.000000e+00> : vector<128xf32>
    %5 = vector.multi_reduction <add>, %4, %cst [0] : vector<16x128xf32> to vector<128xf32>
    %6 = vector.shape_cast %5 : vector<128xf32> to vector<1x128xf32>
    %7 = math.log %2 : vector<1x128xf32>
    %cst_5 = arith.constant 1.000000e+00 : f32
    %8 = vector.broadcast %cst_5 : f32 to vector<1x128xf32>
    %9 = arith.subf %8, %2 : vector<1x128xf32>
    %10 = math.log %9 : vector<1x128xf32>
    %11 = arith.subf %7, %10 : vector<1x128xf32>
    %12 = arith.addf %6, %11 : vector<1x128xf32>
    %13 = arith.negf %12 : vector<1x128xf32>
    %14 = math.exp %13 : vector<1x128xf32>
    %cst_6 = arith.constant 1.000000e+00 : f32
    %15 = vector.broadcast %cst_6 : f32 to vector<1x128xf32>
    %16 = arith.addf %15, %14 : vector<1x128xf32>
    %17 = arith.divf %15, %16 : vector<1x128xf32>
    %c0_7 = arith.constant 0 : index
    %c0_8 = arith.constant 0 : index
    %18 = vector.load %arg4[%c0_7, %c0_8] : memref<1x128xf32, #tpu.memory_space<vmem>>, vector<1x128xf32>
    tpu.vector_store %arg4[%c0_7, %c0_8], %17 {strides = array<i32>} : memref<1x128xf32, #tpu.memory_space<vmem>>, vector<1x128xf32>,
    return
  }
  func.func @transform_0(%arg0: i32) -> (i32, i32) {
    %c0_i32 = arith.constant 0 : i32
    %c0_i32_0 = arith.constant 0 : i32
    %c0_i32_1 = arith.constant 0 : i32
    return %c0_i32, %c0_i32_0 : i32, i32
  }
  func.func @transform_1(%arg0: i32) -> (i32, i32) {
    %c0_i32 = arith.constant 0 : i32
    %c0_i32_0 = arith.constant 0 : i32
    return %c0_i32, %arg0 : i32, i32
  }
  func.func @transform_2(%arg0: i32) -> (i32, i32) {
    %c0_i32 = arith.constant 0 : i32
    %c0_i32_0 = arith.constant 0 : i32
    return %c0_i32, %arg0 : i32, i32
  }
  func.func @transform_3(%arg0: i32) -> (i32, i32) {
    %c0_i32 = arith.constant 0 : i32
    %c0_i32_0 = arith.constant 0 : i32
    return %c0_i32, %arg0 : i32, i32
  }
}

</mosaic_0001>

<llo_original>
// kernel: simple_gbdt_forward.1
$region0: #{simple_gbdt_forward.1}
  #allocation0 [shape = 'u32[]', space=smem, size = 0x4, offset = 0x4, fixed_abs, tag = 'smem constant byte address 0x4 - core index']
  #allocation1 [shape = 'u32[144,128]{1,0:T(1,128)}', space=vmem, size = 0x12000, scoped, tag = 'internal scratch']
  %s0 = inlined_call_operand.vmem [shape: f32[16,1], index: 0, kind: input, shape index: {}]
  %s1 = inlined_call_operand.vmem [shape: f32[16,384], index: 1, kind: input, shape index: {}]
  %s2 = inlined_call_operand.vmem [shape: f32[1,384], index: 2, kind: input, shape index: {}]
  %s3 = inlined_call_operand.vmem [shape: f32[1,384], index: 3, kind: output, shape index: {}]
  %s4 = sld [smem:[#allocation0]]
  $region83: #{simple_gbdt_forward.1} parent=0
    _
  %s6 = ssub.s32 1, %s4
  %s7 = scalar_select 0, %s6, %s4
  $region1: #{simple_gbdt_forward.1} parent=0
    #allocation2 [shape = 'u8[16384]{0}', space=vmem, size = 0x4000, scoped, tag = 'input window, operand 1']
    loop: start=0, step=1, limit=5
    $region2: #{simple_gbdt_forward.1} parent=1 // loop_pre_header
      _
    $region3: #{simple_gbdt_forward.1} parent=1 // loop_header
      %s9 = sphi 0, %s13
      %p10 = scmp.ge.s32.totalorder %s9, 5
      %s17 = sphi 0, %s17
      %s19 = sphi 0, %s17
      %s20 = sphi 0, %s19
      %s34 = sphi 0, %s20
      %s40 = sphi 0, %s42
      %s43 = sphi 0, %s40
      %s44 = sphi 0, %s43
      %s60 = sphi 0, %s44
      %s66 = sphi 0, %s68
      %s69 = sphi 0, %s66
      %s70 = sphi 0, %s69
      %s86 = sphi 0, %s70
      %s92 = sphi 0, %s94
      %s95 = sphi 0, %s92
      %s96 = sphi 0, %s95
      %s112 = sphi 0, %s96
    $region4: #{simple_gbdt_forward.1} parent=1 // loop_header_branch
      %12 = sbr.rel (%p10) target = $region8
    $region5: #{simple_gbdt_forward.1} parent=1 // loop_body
      %s14 = ssub.s32 %s9, 1
      %s15 = ssub.s32 %s9, 2
      %s16 = sadd.s32 %s9, 1
      %s18 = sadd.s32 %s17, 1
      %p21 = scmp.eq.s32.totalorder %s9, 2
      %p22 = scmp.ne.s32.totalorder %s17, %s19
      %p23 = scmp.eq.s32.totalorder %s9, 0
      %p24 = por %p22, %p23
      %p25 = scmp.ne.s32.totalorder %s17, %s19
      %p26 = scmp.eq.s32.totalorder %s14, 2
      %p27 = por %p25, %p26
      %p28 = scmp.ne.s32.totalorder %s19, %s20
      %p29 = scmp.eq.s32.totalorder %s14, 0
      %p30 = por %p28, %p29
      %p31 = scmp.ne.s32.totalorder %s19, %s20
      %p32 = scmp.eq.s32.totalorder %s15, 2
      %p33 = por %p31, %p32
      %p35 = scmp.ne.s32.totalorder %s20, %s34
      %p36 = scmp.eq.s32.totalorder %s15, 0
      %p37 = por %p35, %p36
      %s38 = ssub.s32 %s9, %s16
      %p39 = scmp.eq.s32.totalorder %s38, 0
      %s41 = sadd.s32 %s40, 1
      %s42 = scalar_select %p39, %s40, %s41
      %p45 = pneg %p39
      %p46 = scmp.eq.s32.totalorder %s9, 2
      %p47 = por %p45, %p46
      %p48 = scmp.ne.s32.totalorder %s40, %s43
      %p49 = scmp.eq.s32.totalorder %s9, 0
      %p50 = por %p48, %p49
      %p51 = scmp.ne.s32.totalorder %s40, %s43
      %p52 = scmp.eq.s32.totalorder %s14, 2
      %p53 = por %p51, %p52
      %p54 = scmp.ne.s32.totalorder %s43, %s44
      %p55 = scmp.eq.s32.totalorder %s14, 0
      %p56 = por %p54, %p55
      %p57 = scmp.ne.s32.totalorder %s43, %s44
      %p58 = scmp.eq.s32.totalorder %s15, 2
      %p59 = por %p57, %p58
      %p61 = scmp.ne.s32.totalorder %s44, %s60
      %p62 = scmp.eq.s32.totalorder %s15, 0
      %p63 = por %p61, %p62
      %s64 = ssub.s32 %s9, %s16
      %p65 = scmp.eq.s32.totalorder %s64, 0
      %s67 = sadd.s32 %s66, 1
      %s68 = scalar_select %p65, %s66, %s67
      %p71 = pneg %p65
      %p72 = scmp.eq.s32.totalorder %s9, 2
      %p73 = por %p71, %p72
      %p74 = scmp.ne.s32.totalorder %s66, %s69
      %p75 = scmp.eq.s32.totalorder %s9, 0
      %p76 = por %p74, %p75
      %p77 = scmp.ne.s32.totalorder %s66, %s69
      %p78 = scmp.eq.s32.totalorder %s14, 2
      %p79 = por %p77, %p78
      %p80 = scmp.ne.s32.totalorder %s69, %s70
      %p81 = scmp.eq.s32.totalorder %s14, 0
      %p82 = por %p80, %p81
      %p83 = scmp.ne.s32.totalorder %s69, %s70
      %p84 = scmp.eq.s32.totalorder %s15, 2
      %p85 = por %p83, %p84
      %p87 = scmp.ne.s32.totalorder %s70, %s86
      %p88 = scmp.eq.s32.totalorder %s15, 0
      %p89 = por %p87, %p88
      %s90 = ssub.s32 %s9, %s16
      %p91 = scmp.eq.s32.totalorder %s90, 0
      %s93 = sadd.s32 %s92, 1
      %s94 = scalar_select %p91, %s92, %s93
      %p97 = pneg %p91
      %p98 = scmp.eq.s32.totalorder %s9, 2
      %p99 = por %p97, %p98
      %p100 = scmp.ne.s32.totalorder %s92, %s95
      %p101 = scmp.eq.s32.totalorder %s9, 0
      %p102 = por %p100, %p101
      %p103 = scmp.ne.s32.totalorder %s92, %s95
      %p104 = scmp.eq.s32.totalorder %s14, 2
      %p105 = por %p103, %p104
      %p106 = scmp.ne.s32.totalorder %s95, %s96
      %p107 = scmp.eq.s32.totalorder %s14, 0
      %p108 = por %p106, %p107
      %p109 = scmp.ne.s32.totalorder %s95, %s96
      %p110 = scmp.eq.s32.totalorder %s15, 2
      %p111 = por %p109, %p110
      %p113 = scmp.ne.s32.totalorder %s96, %s112
      %p114 = scmp.eq.s32.totalorder %s15, 0
      %p115 = por %p113, %p114
      %p116 = scmp.le.s32.totalorder 1, %s9
      %p117 = scmp.lt.s32.totalorder %s9, 4
      %p118 = pnand %p116, %p117
      %p119 = pneg %p118
      // Predicated region
      $region9: #{simple_gbdt_forward.1} parent=5 // pred_check
        _
      $region10: #{simple_gbdt_forward.1} parent=5 // pred_check_branch
        %121 = sbr.rel (%p118) target = $region12
      $region11: #{simple_gbdt_forward.1} parent=5 // pred_region
        %s122 = ssub.s32 %s9, 1
        // Predicated region
        $region13: #{simple_gbdt_forward.1} parent=11 // pred_check
          %p123 = pneg %p30
        $region14: #{simple_gbdt_forward.1} parent=11 // pred_check_branch
          %125 = sbr.rel (%p123) target = $region16
        $region15: #{simple_gbdt_forward.1} parent=11 // pred_region
          _
        $region16: #{simple_gbdt_forward.1} parent=11 // pred_fallthru
          _
      $region12: #{simple_gbdt_forward.1} parent=5 // pred_fallthru
        _
      %p126 = scmp.lt.s32.totalorder %s9, 3
      // Predicated region
      $region17: #{simple_gbdt_forward.1} parent=5 // pred_check
        %p127 = pneg %p126
      $region18: #{simple_gbdt_forward.1} parent=5 // pred_check_branch
        %129 = sbr.rel (%p127) target = $region20
      $region19: #{simple_gbdt_forward.1} parent=5 // pred_region
        // Predicated region
        $region21: #{simple_gbdt_forward.1} parent=19 // pred_check
          %p130 = pneg %p50
        $region22: #{simple_gbdt_forward.1} parent=19 // pred_check_branch
          %132 = sbr.rel (%p130) target = $region24
        $region23: #{simple_gbdt_forward.1} parent=19 // pred_region
          %s133 = sand.u32 %s40, 1
          %s134 = sand.u32 %s40, 1
          %s135 = smul.addr %s134, 16
          %s136 = scalar_lea.vmem [#allocation2], %s135
          %s137 = smul.addr %s9, 8
          %s138 = scalar_lea.vmem %s1, %s137
          // Predicated region
          $region25: #{simple_gbdt_forward.1} parent=23 // pred_check
            _
          $region26: #{simple_gbdt_forward.1} parent=23 // pred_check_branch
            %140 = sbr.rel (0) target = $region28
          $region27: #{simple_gbdt_forward.1} parent=23 // pred_region
            // Predicated region
            $region29: #{simple_gbdt_forward.1} parent=27 // pred_check
              _
            $region30: #{simple_gbdt_forward.1} parent=27 // pred_check_branch
              %142 = sbr.rel (0) target = $region32
            $region31: #{simple_gbdt_forward.1} parent=27 // pred_region
              // Predicated region
              $region44: #{simple_gbdt_forward.1} parent=31 // pred_check
                _
              $region45: #{simple_gbdt_forward.1} parent=31 // pred_check_branch
                %159 = sbr.rel (0) target = $region47
              $region46: #{simple_gbdt_forward.1} parent=31 // pred_region
                loop: start=0, step=1, limit=1
                $region48: #{simple_gbdt_forward.1} parent=46 // loop_pre_header
                  _
                $region49: #{simple_gbdt_forward.1} parent=46 // loop_header
                  %s161 = sphi 0, %s165
                  %p162 = scmp.ge.s32.totalorder %s161, 1
                  %s166 = sphi %s138, %s138
                  %s167 = sphi %s136, %s136
                $region50: #{simple_gbdt_forward.1} parent=46 // loop_header_branch
                  %164 = sbr.rel (%p162) target = $region54
                $region51: #{simple_gbdt_forward.1} parent=46 // loop_body
                  %v168 = vld [vmem:[%s166] sm:$0xff]
                  %169 = vst [vmem:[%s167] sm:$0xff] %v168
                  %v170 = vld [vmem:[%s166 + $0x18] sm:$0xff]
                  %171 = vst [vmem:[%s167 + $0x8] sm:$0xff] %v170
                $region52: #{simple_gbdt_forward.1} parent=46 // loop_footer
                  %s165 = sadd.s32 1, %s161
                $region53: #{simple_gbdt_forward.1} parent=46 // loop_footer_branch
                  %160 = sbr.rel target = $region49
                $region54: #{simple_gbdt_forward.1} parent=46 // loop_exit
                  _
              $region47: #{simple_gbdt_forward.1} parent=31 // pred_fallthru
                _
              // Predicated region
              $region55: #{simple_gbdt_forward.1} parent=31 // pred_check
                _
              $region56: #{simple_gbdt_forward.1} parent=31 // pred_check_branch
                %173 = sbr.rel target = $region58
              $region57: #{simple_gbdt_forward.1} parent=31 // pred_region
                _
              $region58: #{simple_gbdt_forward.1} parent=31 // pred_fallthru
                _
            $region32: #{simple_gbdt_forward.1} parent=27 // pred_fallthru
              _
            // Predicated region
            $region33: #{simple_gbdt_forward.1} parent=27 // pred_check
              _
            $region34: #{simple_gbdt_forward.1} parent=27 // pred_check_branch
              %144 = sbr.rel target = $region36
            $region35: #{simple_gbdt_forward.1} parent=27 // pred_region
              loop: start=0, step=1, limit=1
              $region37: #{simple_gbdt_forward.1} parent=35 // loop_pre_header
                _
              $region38: #{simple_gbdt_forward.1} parent=35 // loop_header
                %s147 = sphi 0, %s151
                %p148 = scmp.ge.s32.totalorder %s147, 1
                %s152 = sphi %s138, %s138
                %s153 = sphi %s136, %s136
              $region39: #{simple_gbdt_forward.1} parent=35 // loop_header_branch
                %150 = sbr.rel (%p148) target = $region43
              $region40: #{simple_gbdt_forward.1} parent=35 // loop_body
                %v154 = vld [vmem:[%s152] sm:$0xff]
                %155 = vst [vmem:[%s153] sm:$0xff] %v154
                %v156 = vld [vmem:[%s152 + $0x18] sm:$0xff]
                %157 = vst [vmem:[%s153 + $0x8] sm:$0xff] %v156
              $region41: #{simple_gbdt_forward.1} parent=35 // loop_footer
                %s151 = sadd.s32 1, %s147
              $region42: #{simple_gbdt_forward.1} parent=35 // loop_footer_branch
                %146 = sbr.rel target = $region38
              $region43: #{simple_gbdt_forward.1} parent=35 // loop_exit
                _
            $region36: #{simple_gbdt_forward.1} parent=27 // pred_fallthru
              _
          $region28: #{simple_gbdt_forward.1} parent=23 // pred_fallthru
            _
          %174 = vnop
        $region24: #{simple_gbdt_forward.1} parent=19 // pred_fallthru
          _
        // Predicated region
        $region59: #{simple_gbdt_forward.1} parent=19 // pred_check
          %p175 = pneg %p76
        $region60: #{simple_gbdt_forward.1} parent=19 // pred_check_branch
          %177 = sbr.rel (%p175) target = $region62
        $region61: #{simple_gbdt_forward.1} parent=19 // pred_region
          %p178 = scmp.lt.s32.totalorder %s9, 2
          %s179 = scalar_select %p178, %s9, 2
          %s180 = scalar_lea.vmem %s2, %s179
        $region62: #{simple_gbdt_forward.1} parent=19 // pred_fallthru
          _
      $region20: #{simple_gbdt_forward.1} parent=5 // pred_fallthru
        _
      %p181 = scmp.le.s32.totalorder 1, %s9
      %p182 = scmp.lt.s32.totalorder %s9, 4
      %p183 = pnand %p181, %p182
      %p184 = pneg %p183
      // Predicated region
      $region63: #{simple_gbdt_forward.1} parent=5 // pred_check
        _
      $region64: #{simple_gbdt_forward.1} parent=5 // pred_check_branch
        %186 = sbr.rel (%p183) target = $region66
      $region65: #{simple_gbdt_forward.1} parent=5 // pred_region
        %s187 = ssub.s32 %s9, 1
        %s188 = sand.u32 %s43, 1
        %s189 = sand.u32 %s43, 1
        %s190 = smul.addr %s189, 16
        %s191 = scalar_lea.vmem [#allocation2], %s190
        // Predicated region
        $region67: #{simple_gbdt_forward.1} parent=65 // pred_check
          %p192 = pneg %p56
        $region68: #{simple_gbdt_forward.1} parent=65 // pred_check_branch
          %194 = sbr.rel (%p192) target = $region70
        $region69: #{simple_gbdt_forward.1} parent=65 // pred_region
          _
        $region70: #{simple_gbdt_forward.1} parent=65 // pred_fallthru
          _
        %p195 = pneg %p30
        %p196 = pneg %p27
        %s197 = sand.u32 %s43, 1
        %s198 = sand.u32 %s43, 1
        %s199 = smul.addr %s198, 16
        %s200 = scalar_lea.vmem [#allocation2], %s199
        %p201 = pneg %p56
        %p202 = pneg %p53
        %p203 = scmp.lt.s32.totalorder %s14, 2
        %s204 = scalar_select %p203, %s14, 2
        %s205 = scalar_lea.vmem %s2, %s204
        %p206 = pneg %p82
        %p207 = pneg %p79
        %p208 = pneg %p108
        %p209 = pneg %p105
        %p210 = scmp.lt.s32.totalorder %s14, 2
        %s211 = scalar_select %p210, %s14, 2
        %s212 = scalar_lea.vmem %s3, %s211
        %p213 = scmp.lt.s32.totalorder %s14, 2
        %s214 = scalar_select %p213, %s14, 2
        %s215 = scalar_lea.vmem %s2, %s214
        %p216 = scmp.lt.s32.totalorder %s14, 2
        %s217 = scalar_select %p216, %s14, 2
        %s218 = scalar_lea.vmem %s3, %s217
        %v219 = vld [vmem:[%s191] sm:$0xff]
        %v220 = vld [vmem:[%s191 + $0x8] sm:$0xff]
        %v221 = vld [vmem:[%s0] sm:$0xff]
        %v222 = vld [vmem:[%s0 + $0x8] sm:$0xff]
        %v223 = vld [vmem:[%s215] sm:$0x1]
        %225 = vset.pattern.permute.xlu0 0
        %226 = vperm.xlu0 %225, %v221
        %v227 = vpop.permute.xlu0 %226
        %230 = vset.pattern.permute.xlu0 0
        %231 = vperm.xlu0 %230, %v222
        %v232 = vpop.permute.xlu0 %231
        %v234 = vmul.f32 %v219, %v227
        %v235 = vmul.f32 %v220, %v232
        %v236 = vadd.f32 %v234, %v235
        %v237 = vrot.slane %v236, 4
        %v238 = vadd.f32 %v236, %v237
        %v239 = vrot.slane %v238, 2
        %v240 = vadd.f32 %v238, %v239
        %v241 = vrot.slane %v240, 1
        %v242 = vadd.f32 %v240, %v241
        %v243 = vlog2.pop %v223
        %v244 = vmul.f32 %v243, 0.6931472
        %v245 = vsub.f32 1.0, %v223
        %v246 = vlog2.pop %v245
        %v247 = vmul.f32 %v246, 0.6931472
        %v248 = vsub.f32 %v244, %v247
        %v249 = vadd.f32 %v242, %v248
        %v250 = vxor.u32 %v249, 2147483648
        %v251 = vmul.f32 %v250, 1.442695
        %v252 = vpow.pop %v251
        %v253 = vadd.f32 %v252, 1.0
        %v254 = vrcp.pop %v253
        %v255 = vmul.f32 1.0, %v254
        %256 = vst [vmem:[%s218] sm:$0x1] %v255
        %p257 = scmp.lt.s32.totalorder %s14, 2
        %s258 = scalar_select %p257, %s14, 2
        %s259 = scalar_lea.vmem %s3, %s258
        // Predicated region
        $region71: #{simple_gbdt_forward.1} parent=65 // pred_check
          %p260 = pneg %p105
        $region72: #{simple_gbdt_forward.1} parent=65 // pred_check_branch
          %262 = sbr.rel (%p260) target = $region74
        $region73: #{simple_gbdt_forward.1} parent=65 // pred_region
          _
        $region74: #{simple_gbdt_forward.1} parent=65 // pred_fallthru
          _
      $region66: #{simple_gbdt_forward.1} parent=5 // pred_fallthru
        _
      %p263 = scmp.le.s32.totalorder 2, %s9
      // Predicated region
      $region75: #{simple_gbdt_forward.1} parent=5 // pred_check
        %p264 = pneg %p263
      $region76: #{simple_gbdt_forward.1} parent=5 // pred_check_branch
        %266 = sbr.rel (%p264) target = $region78
      $region77: #{simple_gbdt_forward.1} parent=5 // pred_region
        %s267 = ssub.s32 %s9, 2
        // Predicated region
        $region79: #{simple_gbdt_forward.1} parent=77 // pred_check
          %p268 = pneg %p111
        $region80: #{simple_gbdt_forward.1} parent=77 // pred_check_branch
          %270 = sbr.rel (%p268) target = $region82
        $region81: #{simple_gbdt_forward.1} parent=77 // pred_region
          %p271 = scmp.lt.s32.totalorder %s15, 2
          %s272 = scalar_select %p271, %s15, 2
          %s273 = scalar_lea.vmem %s3, %s272
        $region82: #{simple_gbdt_forward.1} parent=77 // pred_fallthru
          _
      $region78: #{simple_gbdt_forward.1} parent=5 // pred_fallthru
        _
    $region6: #{simple_gbdt_forward.1} parent=1 // loop_footer
      %s13 = sadd.s32 1, %s9
    $region7: #{simple_gbdt_forward.1} parent=1 // loop_footer_branch
      %8 = sbr.rel target = $region3
    $region8: #{simple_gbdt_forward.1} parent=1 // loop_exit
      _

</llo_original>
